<compile_context>
chip_gen: v6e
topology: v6e:2x2x1
jax: 0.10.0
libtpu: 0.0.40
codegen_flags: <defaults>
</compile_context>

<pallas_src>
import functools

import jax
import jax.numpy as jnp
from jax.experimental import pallas as pl
from jax.experimental.pallas import tpu as pltpu

_INV_SQRT2 = 0.7071067811865476


def _round_up(a, b):
    return ((a + b - 1) // b) * b


def _const_spec(shape):
    """BlockSpec for an operand whose block index never changes (weights/biases).

    Single-buffered when the JAX build supports pipeline_mode: re-fetching a
    constant block is pointless, so the second buffer is pure VMEM waste.
    """
    idx_map = lambda i: (0,) * len(shape)
    try:
        return pl.BlockSpec(shape, idx_map, pipeline_mode=pl.Buffered(1))
    except (AttributeError, TypeError, ValueError):
        return pl.BlockSpec(shape, idx_map)


def _embedfc_kernel(x_ref, w1_ref, b1_ref, w2_ref, b2_ref, o_ref):
    """One batch tile: y = GELU(x @ W1 + b1) @ W2 + b2 (f32 accumulation)."""
    x = x_ref[...]
    if x.dtype != w1_ref.dtype:
        # Keep the MXU on its native-rate path (e.g. f32 acts + bf16 weights).
        x = x.astype(w1_ref.dtype)

    h = jnp.dot(x, w1_ref[...], preferred_element_type=jnp.float32)
    h = h + b1_ref[...].astype(jnp.float32)          # (1, out_dim) broadcasts

    # Exact (erf-based) GELU -- matches torch.nn.GELU() default.
    h = 0.5 * h * (1.0 + jax.lax.erf(h * _INV_SQRT2))

    y = jnp.dot(h.astype(w2_ref.dtype), w2_ref[...],
                preferred_element_type=jnp.float32)
    y = y + b2_ref[...].astype(jnp.float32)

    o_ref[...] = y.astype(o_ref.dtype)


def embed_fc(x, params, *, input_dim, out_dim, tm_max=512):
    """Forward pass of EmbedFC. x: any shape whose trailing dims flatten to input_dim."""
    w1, b1, w2, b2 = params["w1"], params["b1"], params["w2"], params["b2"]

    x2d = x.reshape(-1, input_dim)                   # torch: x.view(-1, input_dim)
    m = x2d.shape[0]

    # ---- batch tile selection (no padding, balanced + sublane-aligned) ------
    a_isize = jnp.dtype(x.dtype).itemsize
    w_isize = jnp.dtype(w1.dtype).itemsize
    sub = max(8, 32 // max(a_isize, 1))              # 8 rows f32 / 16 bf16 / 32 int8

    n_tiles = max(1, pl.cdiv(m, tm_max))
    if n_tiles > 1 and n_tiles % 2:
        n_tiles += 1                                 # even grid -> balanced v7x megacore
    tm = _round_up(max(1, pl.cdiv(m, n_tiles)), sub)
    grid = (pl.cdiv(m, tm),)                         # ragged last block is clipped

    # ---- scoped-VMEM: only raise the limit when actually needed (v5e: 16 MiB)
    vmem_need = (2 * tm * (input_dim + out_dim) * a_isize            # dbl-buffered x/out
                 + (input_dim * out_dim + out_dim * out_dim
                    + 2 * out_dim) * w_isize                         # resident weights
                 + 2 * tm * out_dim * 4)                             # f32 intermediates
    vmem_limit = None
    if vmem_need > 12 * 1024 * 1024:
        vmem_limit = min(2 * vmem_need, 48 * 1024 * 1024)

    flops = 2 * m * (input_dim * out_dim + out_dim * out_dim)
    bytes_accessed = (m * (input_dim + out_dim) * a_isize
                      + (input_dim * out_dim + out_dim * out_dim
                         + 2 * out_dim) * w_isize)

    out = pl.pallas_call(
        _embedfc_kernel,
        out_shape=jax.ShapeDtypeStruct((m, out_dim), x.dtype),
        grid_spec=pltpu.PrefetchScalarGridSpec(
            num_scalar_prefetch=0,
            grid=grid,
            in_specs=[
                pl.BlockSpec((tm, input_dim), lambda i: (i, 0)),     # x tile
                _const_spec((input_dim, out_dim)),                   # W1 (resident)
                _const_spec((1, out_dim)),                           # b1
                _const_spec((out_dim, out_dim)),                     # W2 (resident)
                _const_spec((1, out_dim)),                           # b2
            ],
            out_specs=pl.BlockSpec((tm, out_dim), lambda i: (i, 0)),
        ),
        compiler_params=pltpu.CompilerParams(
            dimension_semantics=("parallel",),       # megacore-shards batch on v7x
            vmem_limit_bytes=vmem_limit),
        cost_estimate=pl.CostEstimate(
            flops=int(flops),
            transcendentals=int(m * out_dim),        # one erf per hidden element
            bytes_accessed=int(bytes_accessed)),
    )(x2d, w1, b1, w2, b2)

    return out


def init_params(key, input_dim, out_dim, dtype=jnp.float32):
    """Deterministic synthetic init (uniform ~ PyTorch Linear default ranges)."""
    k1, k2, k3, k4 = jax.random.split(key, 4)
    lim1 = 1.0 / jnp.sqrt(input_dim)
    lim2 = 1.0 / jnp.sqrt(out_dim)
    return {
        # stored as (in, out) == torch weight.T, so y = x @ w + b
        "w1": jax.random.uniform(k1, (input_dim, out_dim), dtype, -lim1, lim1),
        "b1": jax.random.uniform(k2, (1, out_dim), dtype, -lim1, lim1),
        "w2": jax.random.uniform(k3, (out_dim, out_dim), dtype, -lim2, lim2),
        "b2": jax.random.uniform(k4, (1, out_dim), dtype, -lim2, lim2),
    }


def embed_fc_ref(x, params, *, input_dim):
    """Pure-JAX reference for correctness check."""
    x2d = x.reshape(-1, input_dim).astype(jnp.float32)
    h = x2d @ params["w1"].astype(jnp.float32) + params["b1"].astype(jnp.float32)
    h = 0.5 * h * (1.0 + jax.lax.erf(h * _INV_SQRT2))
    y = h @ params["w2"].astype(jnp.float32) + params["b2"].astype(jnp.float32)
    return y


if __name__ == "__main__":
    input_dim = 32
    out_dim = 64

    key = jax.random.PRNGKey(0)
    kx, kp, kx2 = jax.random.split(key, 3)

    params = init_params(kp, input_dim, out_dim)
    fwd = jax.jit(functools.partial(embed_fc, input_dim=input_dim, out_dim=out_dim))

    # Small input with extra leading dims; forward flattens to (-1, 32) = (8, 32).
    x = jax.random.normal(kx, (2, 4, input_dim), dtype=jnp.float32)
    y = fwd(x, params)
    jax.block_until_ready(y)
    y_ref = embed_fc_ref(x, params, input_dim=input_dim)
    assert y.shape == (8, out_dim), y.shape
    assert jnp.allclose(y, y_ref, atol=1e-5, rtol=1e-5), "small-batch mismatch"

    # Larger, non-divisible batch: exercises the adaptive tile (2 tiles of
    # 264/256 rows), the even megacore grid, and the ragged last block.
    x_big = jax.random.normal(kx2, (520, input_dim), dtype=jnp.float32)
    y_big = fwd(x_big, params)
    jax.block_until_ready(y_big)
    y_big_ref = embed_fc_ref(x_big, params, input_dim=input_dim)
    assert y_big.shape == (520, out_dim), y_big.shape
    assert jnp.allclose(y_big, y_big_ref, atol=1e-5, rtol=1e-5), "big-batch mismatch"

    print("KERNEL_OK")
</pallas_src>

<mosaic_0001>
module attributes {stable_mosaic.version = 11 : i64} {
  func.func @_embedfc_kernel(%arg0: i32, %arg1: memref<8x32xf32, #tpu.memory_space<vmem>>, %arg2: memref<32x64xf32, #tpu.memory_space<vmem>>, %arg3: memref<1x64xf32, #tpu.memory_space<vmem>>, %arg4: memref<64x64xf32, #tpu.memory_space<vmem>>, %arg5: memref<1x64xf32, #tpu.memory_space<vmem>>, %arg6: memref<8x64xf32, #tpu.memory_space<vmem>>) attributes {dimension_semantics = [#tpu.dimension_semantics<parallel>], iteration_bounds = array<i64: 1>, scalar_prefetch = 0 : i64, scratch_operands = 0 : i64, tpu.core_type = #tpu.core_type<tc>, window_params = [{transform_indices = @transform_0, window_bounds = array<i64: 8, 32>}, {pipeline_mode = #tpu.pipeline_mode<synchronous>, transform_indices = @transform_1, window_bounds = array<i64: 32, 64>}, {pipeline_mode = #tpu.pipeline_mode<synchronous>, transform_indices = @transform_2, window_bounds = array<i64: 1, 64>}, {pipeline_mode = #tpu.pipeline_mode<synchronous>, transform_indices = @transform_3, window_bounds = array<i64: 64, 64>}, {pipeline_mode = #tpu.pipeline_mode<synchronous>, transform_indices = @transform_4, window_bounds = array<i64: 1, 64>}, {transform_indices = @transform_5, window_bounds = array<i64: 8, 64>}]} {
    %c0 = arith.constant 0 : index
    %c0_0 = arith.constant 0 : index
    %0 = vector.load %arg1[%c0, %c0_0] : memref<8x32xf32, #tpu.memory_space<vmem>>, vector<8x32xf32>
    %c0_1 = arith.constant 0 : index
    %c0_2 = arith.constant 0 : index
    %1 = vector.load %arg2[%c0_1, %c0_2] : memref<32x64xf32, #tpu.memory_space<vmem>>, vector<32x64xf32>
    %cst = arith.constant dense<0.000000e+00> : vector<8x64xf32>
    %2 = tpu.matmul %0, %1, %cst {dimension_numbers = #tpu.dot_dimension_numbers<[1], [0], [0], [1], [0, 0, 1, 1], [], []>} : vector<8x32xf32>, vector<32x64xf32>, vector<8x64xf32> -> vector<8x64xf32>
    %c0_3 = arith.constant 0 : index
    %c0_4 = arith.constant 0 : index
    %3 = vector.load %arg3[%c0_3, %c0_4] : memref<1x64xf32, #tpu.memory_space<vmem>>, vector<1x64xf32>
    %4 = vector.broadcast %3 : vector<1x64xf32> to vector<8x64xf32>
    %5 = arith.addf %2, %4 : vector<8x64xf32>
    %cst_5 = arith.constant 5.000000e-01 : f32
    %6 = vector.broadcast %cst_5 : f32 to vector<8x64xf32>
    %7 = arith.mulf %6, %5 : vector<8x64xf32>
    %cst_6 = arith.constant 0.707106769 : f32
    %8 = vector.broadcast %cst_6 : f32 to vector<8x64xf32>
    %9 = arith.mulf %5, %8 : vector<8x64xf32>
    %10 = math.erf %9 : vector<8x64xf32>
    %cst_7 = arith.constant 1.000000e+00 : f32
    %11 = vector.broadcast %cst_7 : f32 to vector<8x64xf32>
    %12 = arith.addf %11, %10 : vector<8x64xf32>
    %13 = arith.mulf %7, %12 : vector<8x64xf32>
    %c0_8 = arith.constant 0 : index
    %c0_9 = arith.constant 0 : index
    %14 = vector.load %arg4[%c0_8, %c0_9] : memref<64x64xf32, #tpu.memory_space<vmem>>, vector<64x64xf32>
    %cst_10 = arith.constant dense<0.000000e+00> : vector<8x64xf32>
    %15 = tpu.matmul %13, %14, %cst_10 {dimension_numbers = #tpu.dot_dimension_numbers<[1], [0], [0], [1], [0, 0, 1, 1], [], []>} : vector<8x64xf32>, vector<64x64xf32>, vector<8x64xf32> -> vector<8x64xf32>
    %c0_11 = arith.constant 0 : index
    %c0_12 = arith.constant 0 : index
    %16 = vector.load %arg5[%c0_11, %c0_12] : memref<1x64xf32, #tpu.memory_space<vmem>>, vector<1x64xf32>
    %17 = vector.broadcast %16 : vector<1x64xf32> to vector<8x64xf32>
    %18 = arith.addf %15, %17 : vector<8x64xf32>
    %c0_13 = arith.constant 0 : index
    %c0_14 = arith.constant 0 : index
    %19 = vector.load %arg6[%c0_13, %c0_14] : memref<8x64xf32, #tpu.memory_space<vmem>>, vector<8x64xf32>
    tpu.vector_store %arg6[%c0_13, %c0_14], %18 {strides = array<i32>} : memref<8x64xf32, #tpu.memory_space<vmem>>, vector<8x64xf32>,
    return
  }
  func.func @transform_0(%arg0: i32) -> (i32, i32) {
    %c0_i32 = arith.constant 0 : i32
    %c0_i32_0 = arith.constant 0 : i32
    return %arg0, %c0_i32 : i32, i32
  }
  func.func @transform_1(%arg0: i32) -> (i32, i32) {
    %c0_i32 = arith.constant 0 : i32
    %c0_i32_0 = arith.constant 0 : i32
    %c0_i32_1 = arith.constant 0 : i32
    return %c0_i32, %c0_i32_0 : i32, i32
  }
  func.func @transform_2(%arg0: i32) -> (i32, i32) {
    %c0_i32 = arith.constant 0 : i32
    %c0_i32_0 = arith.constant 0 : i32
    %c0_i32_1 = arith.constant 0 : i32
    return %c0_i32, %c0_i32_0 : i32, i32
  }
  func.func @transform_3(%arg0: i32) -> (i32, i32) {
    %c0_i32 = arith.constant 0 : i32
    %c0_i32_0 = arith.constant 0 : i32
    %c0_i32_1 = arith.constant 0 : i32
    return %c0_i32, %c0_i32_0 : i32, i32
  }
  func.func @transform_4(%arg0: i32) -> (i32, i32) {
    %c0_i32 = arith.constant 0 : i32
    %c0_i32_0 = arith.constant 0 : i32
    %c0_i32_1 = arith.constant 0 : i32
    return %c0_i32, %c0_i32_0 : i32, i32
  }
  func.func @transform_5(%arg0: i32) -> (i32, i32) {
    %c0_i32 = arith.constant 0 : i32
    %c0_i32_0 = arith.constant 0 : i32
    return %arg0, %c0_i32 : i32, i32
  }
}

</mosaic_0001>

<llo_original>
// kernel: embed_fc.1
$region0: #{embed_fc.1}
  #allocation0 [shape = 'u32[]', space=smem, size = 0x4, offset = 0x4, fixed_abs, tag = 'smem constant byte address 0x4 - core index']
  #allocation1 [shape = 'u32[144,128]{1,0:T(1,128)}', space=vmem, size = 0x12000, scoped, tag = 'internal scratch']
  %s0 = inlined_call_operand.hbm [shape: f32[8,32], index: 0, kind: input, shape index: {}]
  %s1 = inlined_call_operand.hbm [shape: f32[32,64], index: 1, kind: input, shape index: {}]
  %s2 = inlined_call_operand.vmem [shape: f32[1,64], index: 2, kind: input, shape index: {}]
  %s3 = inlined_call_operand.hbm [shape: f32[64,64], index: 3, kind: input, shape index: {}]
  %s4 = inlined_call_operand.vmem [shape: f32[1,64], index: 4, kind: input, shape index: {}]
  %s5 = inlined_call_operand.hbm [shape: f32[8,64], index: 5, kind: output, shape index: {}]
  %s6 = sld [smem:[#allocation0]]
  $region42: #{embed_fc.1} parent=0
    _
  %s8 = ssub.s32 1, %s6
  %s9 = scalar_select 0, %s8, %s6
  $region1: #{embed_fc.1} parent=0
    #allocation2 [shape = 'u8[4096]{0}', space=vmem, size = 0x1000, scoped, tag = 'input window, operand 0, single buffered']
    #allocation3 [shape = 's32[1]{0}', space=sflag, size = 0x4, scoped, tag = 'scoped memory for embed_fc.1']
    #allocation4 [shape = 's32[1]{0}', space=sflag, size = 0x4, scoped, tag = 'scoped memory for embed_fc.1']
    #allocation5 [shape = 'u8[16384]{0}', space=vmem, size = 0x4000, scoped, tag = 'input window, operand 1, single buffered']
    #allocation6 [shape = 's32[1]{0}', space=sflag, size = 0x4, scoped, tag = 'scoped memory for embed_fc.1']
    #allocation7 [shape = 'u8[32768]{0}', space=vmem, size = 0x8000, scoped, tag = 'input window, operand 3, single buffered']
    #allocation8 [shape = 'u8[4096]{0}', space=vmem, size = 0x1000, scoped, tag = 'output window, operand 0, single buffered']
    %10 = vsyncpa [#allocation3], 0
    %11 = vsyncpa [#allocation6], 0
    %12 = vsyncpa [#allocation4], 0
    // Predicated region
    $region2: #{embed_fc.1} parent=1 // pred_check
      _
    $region3: #{embed_fc.1} parent=1 // pred_check_branch
      %14 = sbr.rel (0) target = $region5
    $region4: #{embed_fc.1} parent=1 // pred_region
      %s16 = ssub.s32 128, 128
      %17 = vsyncadd [#allocation3], %s16
      %s19 = sshll.u32 [#allocation2], 4
      %s20 = int_to_ptr.vmem [resolvable:$true] %s19
      %22 = dma.hbm_to_vmem [thread:$0]  %s0, 128, %s20, [#allocation3]
    $region5: #{embed_fc.1} parent=1 // pred_fallthru
      _
    // Predicated region
    $region6: #{embed_fc.1} parent=1 // pred_check
      _
    $region7: #{embed_fc.1} parent=1 // pred_check_branch
      %24 = sbr.rel (0) target = $region9
    $region8: #{embed_fc.1} parent=1 // pred_region
      %s26 = ssub.s32 512, 512
      %27 = vsyncadd [#allocation6], %s26
      %s28 = sshll.u32 [#allocation5], 4
      %s29 = int_to_ptr.vmem [resolvable:$true] %s28
      %34 = dma.hbm_to_vmem [thread:$0]  %s1, 512, %s29, [#allocation6], 128, 128, 8
    $region9: #{embed_fc.1} parent=1 // pred_fallthru
      _
    // Predicated region
    $region10: #{embed_fc.1} parent=1 // pred_check
      _
    $region11: #{embed_fc.1} parent=1 // pred_check_branch
      %36 = sbr.rel (0) target = $region13
    $region12: #{embed_fc.1} parent=1 // pred_region
      _
    $region13: #{embed_fc.1} parent=1 // pred_fallthru
      _
    // Predicated region
    $region14: #{embed_fc.1} parent=1 // pred_check
      _
    $region15: #{embed_fc.1} parent=1 // pred_check_branch
      %38 = sbr.rel (0) target = $region17
    $region16: #{embed_fc.1} parent=1 // pred_region
      %s40 = ssub.s32 1024, 1024
      %41 = vsyncadd [#allocation6], %s40
      %s42 = sshll.u32 [#allocation7], 4
      %s43 = int_to_ptr.vmem [resolvable:$true] %s42
      %48 = dma.hbm_to_vmem [thread:$0]  %s3, 1024, %s43, [#allocation6], 128, 128, 8
    $region17: #{embed_fc.1} parent=1 // pred_fallthru
      _
    // Predicated region
    $region18: #{embed_fc.1} parent=1 // pred_check
      _
    $region19: #{embed_fc.1} parent=1 // pred_check_branch
      %50 = sbr.rel (0) target = $region21
    $region20: #{embed_fc.1} parent=1 // pred_region
      _
    $region21: #{embed_fc.1} parent=1 // pred_fallthru
      _
    // Predicated region
    $region22: #{embed_fc.1} parent=1 // pred_check
      _
    $region23: #{embed_fc.1} parent=1 // pred_check_branch
      %52 = sbr.rel (0) target = $region25
    $region24: #{embed_fc.1} parent=1 // pred_region
      %53 = dma.done [#allocation3], 128
    $region25: #{embed_fc.1} parent=1 // pred_fallthru
      _
    // Predicated region
    $region26: #{embed_fc.1} parent=1 // pred_check
      _
    $region27: #{embed_fc.1} parent=1 // pred_check_branch
      %55 = sbr.rel (0) target = $region29
    $region28: #{embed_fc.1} parent=1 // pred_region
      %56 = dma.done [#allocation6], 512
    $region29: #{embed_fc.1} parent=1 // pred_fallthru
      _
    // Predicated region
    $region30: #{embed_fc.1} parent=1 // pred_check
      _
    $region31: #{embed_fc.1} parent=1 // pred_check_branch
      %58 = sbr.rel (0) target = $region33
    $region32: #{embed_fc.1} parent=1 // pred_region
      %59 = dma.done [#allocation6], 1024
    $region33: #{embed_fc.1} parent=1 // pred_fallthru
      _
    %v60 = vld [vmem:[#allocation2] sm:$0xff]
    %v61 = vld [vmem:[#allocation5] sm:$0xff]
    %v62 = vld [vmem:[#allocation5 + $0x8] sm:$0xff]
    %v63 = vld [vmem:[#allocation5 + $0x10] sm:$0xff]
    %v64 = vld [vmem:[#allocation5 + $0x18] sm:$0xff]
    %v65 = vld [vmem:[%s2] sm:$0x1]
    %v67 = vlaneseq
    %v68 = vshrl.u32 %v67, 7
    %v69 = vsub.s32 0, %v68
    %v70 = vrot.slane %v65, %v69
    %vm72 = vcmask 261120
    %v74 = vsel %vm72, %v60, 0
    %76 = vmatprep.subr.mxu0 0.0
    %77 = vmatpush1.msra.mxu0 0.0
    %78 = vmatprep.subr.mxu0 0.0
    %79 = vmatpush1.msra.mxu0 0.0
    %80 = vmatprep.subr.mxu0 0.0
    %81 = vmatpush1.msra.mxu0 0.0
    %82 = vmatprep.subr.mxu0 0.0
    %83 = vmatpush1.msra.mxu0 0.0
    %84 = vmatprep.subr.mxu0 0.0
    %85 = vmatpush1.msra.mxu0 0.0
    %86 = vmatprep.subr.mxu0 0.0
    %87 = vmatpush1.msra.mxu0 0.0
    %88 = vmatprep.subr.mxu0 0.0
    %89 = vmatpush1.msra.mxu0 0.0
    %90 = vmatprep.subr.mxu0 0.0
    %91 = vmatpush1.msra.mxu0 0.0
    %92 = vmatprep.subr.mxu0 0.0
    %93 = vmatpush1.msra.mxu0 0.0
    %94 = vmatprep.subr.mxu0 0.0
    %95 = vmatpush1.msra.mxu0 0.0
    %96 = vmatprep.subr.mxu0 0.0
    %97 = vmatpush1.msra.mxu0 0.0
    %98 = vmatprep.subr.mxu0 0.0
    %99 = vmatpush1.msra.mxu0 0.0
    %100 = vmatprep.subr.mxu0 0.0
    %101 = vmatpush1.msra.mxu0 %v64
    %102 = vmatprep.subr.mxu0 0.0
    %103 = vmatpush1.msra.mxu0 %v63
    %104 = vmatprep.subr.mxu0 0.0
    %105 = vmatpush1.msra.mxu0 %v62
    %106 = vmatprep.subr.mxu0 0.0
    %107 = vmatpush1.msra.mxu0 %v61
    %108 = vmatprep.subr.mxu0 0.0
    %109 = vmatpush2.msra.mxu0 0.0
    %110 = vmatprep.subr.mxu0 0.0
    %111 = vmatpush2.msra.mxu0 0.0
    %112 = vmatprep.subr.mxu0 0.0
    %113 = vmatpush2.msra.mxu0 0.0
    %114 = vmatprep.subr.mxu0 0.0
    %115 = vmatpush2.msra.mxu0 0.0
    %116 = vmatprep.subr.mxu0 0.0
    %117 = vmatpush2.msra.mxu0 0.0
    %118 = vmatprep.subr.mxu0 0.0
    %119 = vmatpush2.msra.mxu0 0.0
    %120 = vmatprep.subr.mxu0 0.0
    %121 = vmatpush2.msra.mxu0 0.0
    %122 = vmatprep.subr.mxu0 0.0
    %123 = vmatpush2.msra.mxu0 0.0
    %124 = vmatprep.subr.mxu0 0.0
    %125 = vmatpush2.msra.mxu0 0.0
    %126 = vmatprep.subr.mxu0 0.0
    %127 = vmatpush2.msra.mxu0 0.0
    %128 = vmatprep.subr.mxu0 0.0
    %129 = vmatpush2.msra.mxu0 0.0
    %130 = vmatprep.subr.mxu0 0.0
    %131 = vmatpush2.msra.mxu0 0.0
    %132 = vmatprep.subr.mxu0 0.0
    %133 = vmatpush2.msra.mxu0 0.0
    %134 = vmatprep.subr.mxu0 0.0
    %135 = vmatpush2.msra.mxu0 0.0
    %136 = vmatprep.subr.mxu0 0.0
    %137 = vmatpush2.msra.mxu0 0.0
    %138 = vmatprep.subr.mxu0 0.0
    %139 = vmatpush2.msra.mxu0 0.0
    %140 = vmatprep.mubr.f32.mxu0 0.0
    %141 = vmatmul.mubr.f32.gmra.mxu0 %v74
    %v142 = vpop.f32.mrf.mxu0
    %v143 = vadd.f32 %v70, %v142
    %v144 = vpop.f32.mrf.mxu0
    %145 = vdwg.mxu0
    %v146 = vmul.f32 %v143, 0.5
    %v147 = vmul.f32 %v143, 0.70710677
    %v148 = verf.f32.pop %v147
    %v149 = vadd.f32 %v148, 1.0
    %v150 = vmul.f32 %v146, %v149
    %v151 = vld [vmem:[#allocation7] sm:$0xff]
    %v152 = vld [vmem:[#allocation7 + $0x8] sm:$0xff]
    %v153 = vld [vmem:[#allocation7 + $0x10] sm:$0xff]
    %v154 = vld [vmem:[#allocation7 + $0x18] sm:$0xff]
    %v155 = vld [vmem:[#allocation7 + $0x20] sm:$0xff]
    %v156 = vld [vmem:[#allocation7 + $0x28] sm:$0xff]
    %v157 = vld [vmem:[#allocation7 + $0x30] sm:$0xff]
    %v158 = vld [vmem:[#allocation7 + $0x38] sm:$0xff]
    %v159 = vld [vmem:[%s4] sm:$0x1]
    %v161 = vlaneseq
    %v162 = vshrl.u32 %v161, 7
    %v163 = vsub.s32 0, %v162
    %v164 = vrot.slane %v159, %v163
    %vm166 = vcmask 523264
    %v168 = vsel %vm166, %v150, 0
    %170 = vmatprep.subr.mxu0 0.0
    %171 = vmatpush1.msra.mxu0 0.0
    %172 = vmatprep.subr.mxu0 0.0
    %173 = vmatpush1.msra.mxu0 0.0
    %174 = vmatprep.subr.mxu0 0.0
    %175 = vmatpush1.msra.mxu0 0.0
    %176 = vmatprep.subr.mxu0 0.0
    %177 = vmatpush1.msra.mxu0 0.0
    %178 = vmatprep.subr.mxu0 0.0
    %179 = vmatpush1.msra.mxu0 0.0
    %180 = vmatprep.subr.mxu0 0.0
    %181 = vmatpush1.msra.mxu0 0.0
    %182 = vmatprep.subr.mxu0 0.0
    %183 = vmatpush1.msra.mxu0 0.0
    %184 = vmatprep.subr.mxu0 0.0
    %185 = vmatpush1.msra.mxu0 0.0
    %186 = vmatprep.subr.mxu0 0.0
    %187 = vmatpush1.msra.mxu0 %v158
    %188 = vmatprep.subr.mxu0 0.0
    %189 = vmatpush1.msra.mxu0 %v157
    %190 = vmatprep.subr.mxu0 0.0
    %191 = vmatpush1.msra.mxu0 %v156
    %192 = vmatprep.subr.mxu0 0.0
    %193 = vmatpush1.msra.mxu0 %v155
    %194 = vmatprep.subr.mxu0 0.0
    %195 = vmatpush1.msra.mxu0 %v154
    %196 = vmatprep.subr.mxu0 0.0
    %197 = vmatpush1.msra.mxu0 %v153
    %198 = vmatprep.subr.mxu0 0.0
    %199 = vmatpush1.msra.mxu0 %v152
    %200 = vmatprep.subr.mxu0 0.0
    %201 = vmatpush1.msra.mxu0 %v151
    %202 = vmatprep.subr.mxu0 0.0
    %203 = vmatpush2.msra.mxu0 0.0
    %204 = vmatprep.subr.mxu0 0.0
    %205 = vmatpush2.msra.mxu0 0.0
    %206 = vmatprep.subr.mxu0 0.0
    %207 = vmatpush2.msra.mxu0 0.0
    %208 = vmatprep.subr.mxu0 0.0
    %209 = vmatpush2.msra.mxu0 0.0
    %210 = vmatprep.subr.mxu0 0.0
    %211 = vmatpush2.msra.mxu0 0.0
    %212 = vmatprep.subr.mxu0 0.0
    %213 = vmatpush2.msra.mxu0 0.0
    %214 = vmatprep.subr.mxu0 0.0
    %215 = vmatpush2.msra.mxu0 0.0
    %216 = vmatprep.subr.mxu0 0.0
    %217 = vmatpush2.msra.mxu0 0.0
    %218 = vmatprep.subr.mxu0 0.0
    %219 = vmatpush2.msra.mxu0 0.0
    %220 = vmatprep.subr.mxu0 0.0
    %221 = vmatpush2.msra.mxu0 0.0
    %222 = vmatprep.subr.mxu0 0.0
    %223 = vmatpush2.msra.mxu0 0.0
    %224 = vmatprep.subr.mxu0 0.0
    %225 = vmatpush2.msra.mxu0 0.0
    %226 = vmatprep.subr.mxu0 0.0
    %227 = vmatpush2.msra.mxu0 0.0
    %228 = vmatprep.subr.mxu0 0.0
    %229 = vmatpush2.msra.mxu0 0.0
    %230 = vmatprep.subr.mxu0 0.0
    %231 = vmatpush2.msra.mxu0 0.0
    %232 = vmatprep.subr.mxu0 0.0
    %233 = vmatpush2.msra.mxu0 0.0
    %234 = vmatprep.mubr.f32.mxu0 0.0
    %235 = vmatmul.mubr.f32.gmra.mxu0 %v168
    %v236 = vpop.f32.mrf.mxu0
    %v237 = vadd.f32 %v164, %v236
    %v238 = vpop.f32.mrf.mxu0
    %239 = vdwg.mxu0
    %240 = vst.msk [vmem:[#allocation8] sm:$0xff] %vm166, %v237
    // Predicated region
    $region34: #{embed_fc.1} parent=1 // pred_check
      _
    $region35: #{embed_fc.1} parent=1 // pred_check_branch
      %242 = sbr.rel (0) target = $region37
    $region36: #{embed_fc.1} parent=1 // pred_region
      %s244 = ssub.s32 128, 128
      %245 = vsyncadd [#allocation4], %s244
      %s247 = sshll.u32 [#allocation8], 4
      %s248 = int_to_ptr.vmem [resolvable:$true] %s247
      %250 = dma.vmem_to_hbm [thread:$0]  %s248, 128, %s5, [#allocation4]
    $region37: #{embed_fc.1} parent=1 // pred_fallthru
      _
    // Predicated region
    $region38: #{embed_fc.1} parent=1 // pred_check
      _
    $region39: #{embed_fc.1} parent=1 // pred_check_branch
      %252 = sbr.rel (0) target = $region41
    $region40: #{embed_fc.1} parent=1 // pred_region
      %253 = dma.done [#allocation4], 128
    $region41: #{embed_fc.1} parent=1 // pred_fallthru
      _
    %254 = vsyncpa [#allocation3], 1
    %255 = vsyncpa [#allocation6], 1
    %256 = vsyncpa [#allocation4], 1

</llo_original>
